<compile_context>
chip_gen: v6e
topology: v6e:2x2x1
jax: 0.10.0
libtpu: 0.0.40
codegen_flags: <defaults>
</compile_context>

<pallas_src>
import math
import jax
import jax.numpy as jnp
from jax.experimental import pallas as pl
from jax.experimental.pallas import tpu as pltpu


def make_mlp_kernel(num_layers, activation="relu", discrim=False):
    """Build a fused Pallas kernel: all Linear layers + activations for one
    batch tile. Kernel refs: (x, w0, b0, ..., w_{L-1}, b_{L-1}, out)."""

    def kernel(*refs):
        x_ref = refs[0]
        o_ref = refs[-1]
        params = refs[1:-1]

        # bf16 operands into the MXU, f32 accumulation.
        h = x_ref[...].astype(jnp.bfloat16)
        for i in range(num_layers):
            w = params[2 * i][...]        # bf16 [in, out], resident in VMEM
            b = params[2 * i + 1][...]    # f32  [1,  out]
            h = jnp.dot(h, w, preferred_element_type=jnp.float32) + b
            is_last = i == num_layers - 1
            if not is_last:
                if activation == "relu":
                    h = jnp.maximum(h, 0.0)       # VPU
                elif activation == "sigmoid":
                    h = jax.nn.sigmoid(h)         # EUP
                h = h.astype(jnp.bfloat16)        # bf16 back into the next MXU op
            elif discrim:
                h = jax.nn.sigmoid(h)
        # TODO(synk): dropout (module arg `dropout != -1`) not implemented; the
        # default configuration (dropout=-1) applies no dropout, which is what
        # this kernel reproduces.
        # Note: out_dim < 128 -> the final store is a masked vst; cheap at
        # these output widths, so we keep the natural [batch, out] layout.
        o_ref[...] = h.astype(o_ref.dtype)

    return kernel


def init_mlp_params(key, input_dim, output_dim, hidden_size=(1024, 512)):
    """Deterministic init mimicking torch.nn.Linear's U(-1/sqrt(fan_in), +)."""
    dims = [input_dim] + list(hidden_size) + [output_dim]
    params = []
    for i in range(len(dims) - 1):
        fan_in, fan_out = dims[i], dims[i + 1]
        bound = 1.0 / math.sqrt(fan_in)
        key, kw, kb = jax.random.split(key, 3)
        w = jax.random.uniform(kw, (fan_in, fan_out), jnp.float32, -bound, bound)
        b = jax.random.uniform(kb, (1, fan_out), jnp.float32, -bound, bound)
        params.append((w, b))
    return params


def _vmem_capacity_bytes():
    try:
        return int(pltpu.get_tpu_info().vmem_capacity_bytes)
    except Exception:
        return 64 << 20  # conservative fallback (v7x-sized VMEM)


def mlp_forward(x, params, activation="relu", discrim=False, tile_b=None):
    """x: [batch, input_dim] float32. Returns [batch, output_dim] float32."""
    batch, in_dim = x.shape
    out_dim = params[-1][0].shape[1]
    num_layers = len(params)
    dims = [in_dim] + [w.shape[1] for w, _ in params]

    vmem_bytes = _vmem_capacity_bytes()
    if tile_b is None:
        # Roughly half-sized batch tiles on 64 MiB-VMEM parts (v7x), larger on
        # 128 MiB parts (v5e/v6e). Multiples of 256 feed the 256x256 MXU.
        tile_b = 512 if vmem_bytes <= (64 << 20) else 1024
    if batch <= tile_b:
        tile_b = batch  # one full-extent tile (always a legal block shape)
    grid = (pl.cdiv(batch, tile_b),)

    kernel = make_mlp_kernel(num_layers, activation=activation, discrim=discrim)

    flat_params = []
    in_specs = [pl.BlockSpec((tile_b, in_dim), lambda i: (i, 0))]
    for w, b in params:
        flat_params.append(w.astype(jnp.bfloat16))   # bf16 weights into the MXU
        flat_params.append(b.astype(jnp.float32))    # f32 bias
        # Constant index_map -> DMA'd once, stays resident across batch tiles.
        in_specs.append(pl.BlockSpec(w.shape, lambda i: (0, 0)))
        in_specs.append(pl.BlockSpec(b.shape, lambda i: (0, 0)))
    out_specs = pl.BlockSpec((tile_b, out_dim), lambda i: (i, 0))

    # Advisory cost estimate for XLA's scheduler.
    flops = 2 * batch * sum(dims[i] * dims[i + 1] for i in range(num_layers))
    transcendentals = 0
    if activation == "sigmoid":
        transcendentals += batch * sum(dims[1:-1])
    if discrim:
        transcendentals += batch * out_dim
    bytes_accessed = (
        x.size * x.dtype.itemsize
        + sum(p.size * p.dtype.itemsize for p in flat_params)
        + batch * out_dim * 4
    )

    return pl.pallas_call(
        kernel,
        out_shape=jax.ShapeDtypeStruct((batch, out_dim), jnp.float32),
        grid=grid,
        in_specs=in_specs,
        out_specs=out_specs,
        compiler_params=pltpu.CompilerParams(
            dimension_semantics=("parallel",),
            vmem_limit_bytes=min(int(vmem_bytes * 3 // 4), 100 << 20),
        ),
        cost_estimate=pl.CostEstimate(
            flops=flops,
            transcendentals=transcendentals,
            bytes_accessed=bytes_accessed,
        ),
    )(x, *flat_params)


if __name__ == "__main__":
    # Small shapes consistent with the module's forward:
    #   MLP(input_dim=32, output_dim=16, hidden_size=(64, 32), activation='relu')
    batch, input_dim, output_dim = 8, 32, 16
    hidden_size = (64, 32)

    key = jax.random.PRNGKey(0)
    key, kx = jax.random.split(key)
    x = jax.random.normal(kx, (batch, input_dim), dtype=jnp.float32)

    params = init_mlp_params(key, input_dim, output_dim, hidden_size)

    out = mlp_forward(x, params, activation="relu", discrim=False)
    out = jax.block_until_ready(out)

    # Pure-JAX f32 reference. Kernel uses bf16 MXU operands with f32
    # accumulation, so compare with a loosened tolerance.
    ref = x
    for i, (w, b) in enumerate(params):
        ref = ref @ w + b
        if i != len(params) - 1:
            ref = jnp.maximum(ref, 0.0)

    assert out.shape == (batch, output_dim)
    max_err = float(jnp.max(jnp.abs(out - ref)))
    assert jnp.allclose(out, ref, atol=5e-2, rtol=5e-2), f"max abs err {max_err}"

    print("KERNEL_OK")
</pallas_src>

<mosaic_0001>
module attributes {stable_mosaic.version = 11 : i64} {
  func.func @kernel(%arg0: i32, %arg1: memref<8x32xf32, #tpu.memory_space<vmem>>, %arg2: memref<32x64xbf16, #tpu.memory_space<vmem>>, %arg3: memref<1x64xf32, #tpu.memory_space<vmem>>, %arg4: memref<64x32xbf16, #tpu.memory_space<vmem>>, %arg5: memref<1x32xf32, #tpu.memory_space<vmem>>, %arg6: memref<32x16xbf16, #tpu.memory_space<vmem>>, %arg7: memref<1x16xf32, #tpu.memory_space<vmem>>, %arg8: memref<8x16xf32, #tpu.memory_space<vmem>>) attributes {dimension_semantics = [#tpu.dimension_semantics<parallel>], iteration_bounds = array<i64: 1>, scalar_prefetch = 0 : i64, scratch_operands = 0 : i64, tpu.core_type = #tpu.core_type<tc>, window_params = [{transform_indices = @transform_0, window_bounds = array<i64: 8, 32>}, {pipeline_mode = #tpu.pipeline_mode<synchronous>, transform_indices = @transform_1, window_bounds = array<i64: 32, 64>}, {pipeline_mode = #tpu.pipeline_mode<synchronous>, transform_indices = @transform_2, window_bounds = array<i64: 1, 64>}, {pipeline_mode = #tpu.pipeline_mode<synchronous>, transform_indices = @transform_3, window_bounds = array<i64: 64, 32>}, {pipeline_mode = #tpu.pipeline_mode<synchronous>, transform_indices = @transform_4, window_bounds = array<i64: 1, 32>}, {pipeline_mode = #tpu.pipeline_mode<synchronous>, transform_indices = @transform_5, window_bounds = array<i64: 32, 16>}, {pipeline_mode = #tpu.pipeline_mode<synchronous>, transform_indices = @transform_6, window_bounds = array<i64: 1, 16>}, {transform_indices = @transform_7, window_bounds = array<i64: 8, 16>}]} {
    %c0 = arith.constant 0 : index
    %c0_0 = arith.constant 0 : index
    %0 = vector.load %arg1[%c0, %c0_0] : memref<8x32xf32, #tpu.memory_space<vmem>>, vector<8x32xf32>
    %1 = arith.truncf %0 : vector<8x32xf32> to vector<8x32xbf16>
    %c0_1 = arith.constant 0 : index
    %c0_2 = arith.constant 0 : index
    %2 = vector.load %arg2[%c0_1, %c0_2] : memref<32x64xbf16, #tpu.memory_space<vmem>>, vector<32x64xbf16>
    %c0_3 = arith.constant 0 : index
    %c0_4 = arith.constant 0 : index
    %3 = vector.load %arg3[%c0_3, %c0_4] : memref<1x64xf32, #tpu.memory_space<vmem>>, vector<1x64xf32>
    %cst = arith.constant dense<0.000000e+00> : vector<8x64xf32>
    %4 = tpu.matmul %1, %2, %cst {dimension_numbers = #tpu.dot_dimension_numbers<[1], [0], [0], [1], [0, 0, 1, 1], [], []>} : vector<8x32xbf16>, vector<32x64xbf16>, vector<8x64xf32> -> vector<8x64xf32>
    %5 = vector.broadcast %3 : vector<1x64xf32> to vector<8x64xf32>
    %6 = arith.addf %4, %5 : vector<8x64xf32>
    %cst_5 = arith.constant 0.000000e+00 : f32
    %7 = vector.broadcast %cst_5 : f32 to vector<8x64xf32>
    %8 = arith.maximumf %6, %7 : vector<8x64xf32>
    %9 = arith.truncf %8 : vector<8x64xf32> to vector<8x64xbf16>
    %c0_6 = arith.constant 0 : index
    %c0_7 = arith.constant 0 : index
    %10 = vector.load %arg4[%c0_6, %c0_7] : memref<64x32xbf16, #tpu.memory_space<vmem>>, vector<64x32xbf16>
    %c0_8 = arith.constant 0 : index
    %c0_9 = arith.constant 0 : index
    %11 = vector.load %arg5[%c0_8, %c0_9] : memref<1x32xf32, #tpu.memory_space<vmem>>, vector<1x32xf32>
    %cst_10 = arith.constant dense<0.000000e+00> : vector<8x32xf32>
    %12 = tpu.matmul %9, %10, %cst_10 {dimension_numbers = #tpu.dot_dimension_numbers<[1], [0], [0], [1], [0, 0, 1, 1], [], []>} : vector<8x64xbf16>, vector<64x32xbf16>, vector<8x32xf32> -> vector<8x32xf32>
    %13 = vector.broadcast %11 : vector<1x32xf32> to vector<8x32xf32>
    %14 = arith.addf %12, %13 : vector<8x32xf32>
    %cst_11 = arith.constant 0.000000e+00 : f32
    %15 = vector.broadcast %cst_11 : f32 to vector<8x32xf32>
    %16 = arith.maximumf %14, %15 : vector<8x32xf32>
    %17 = arith.truncf %16 : vector<8x32xf32> to vector<8x32xbf16>
    %c0_12 = arith.constant 0 : index
    %c0_13 = arith.constant 0 : index
    %18 = vector.load %arg6[%c0_12, %c0_13] : memref<32x16xbf16, #tpu.memory_space<vmem>>, vector<32x16xbf16>
    %c0_14 = arith.constant 0 : index
    %c0_15 = arith.constant 0 : index
    %19 = vector.load %arg7[%c0_14, %c0_15] : memref<1x16xf32, #tpu.memory_space<vmem>>, vector<1x16xf32>
    %cst_16 = arith.constant dense<0.000000e+00> : vector<8x16xf32>
    %20 = tpu.matmul %17, %18, %cst_16 {dimension_numbers = #tpu.dot_dimension_numbers<[1], [0], [0], [1], [0, 0, 1, 1], [], []>} : vector<8x32xbf16>, vector<32x16xbf16>, vector<8x16xf32> -> vector<8x16xf32>
    %21 = vector.broadcast %19 : vector<1x16xf32> to vector<8x16xf32>
    %22 = arith.addf %20, %21 : vector<8x16xf32>
    %c0_17 = arith.constant 0 : index
    %c0_18 = arith.constant 0 : index
    %23 = vector.load %arg8[%c0_17, %c0_18] : memref<8x16xf32, #tpu.memory_space<vmem>>, vector<8x16xf32>
    tpu.vector_store %arg8[%c0_17, %c0_18], %22 {strides = array<i32>} : memref<8x16xf32, #tpu.memory_space<vmem>>, vector<8x16xf32>,
    return
  }
  func.func @transform_0(%arg0: i32) -> (i32, i32) {
    %c0_i32 = arith.constant 0 : i32
    %c0_i32_0 = arith.constant 0 : i32
    return %arg0, %c0_i32 : i32, i32
  }
  func.func @transform_1(%arg0: i32) -> (i32, i32) {
    %c0_i32 = arith.constant 0 : i32
    %c0_i32_0 = arith.constant 0 : i32
    %c0_i32_1 = arith.constant 0 : i32
    return %c0_i32, %c0_i32_0 : i32, i32
  }
  func.func @transform_2(%arg0: i32) -> (i32, i32) {
    %c0_i32 = arith.constant 0 : i32
    %c0_i32_0 = arith.constant 0 : i32
    %c0_i32_1 = arith.constant 0 : i32
    return %c0_i32, %c0_i32_0 : i32, i32
  }
  func.func @transform_3(%arg0: i32) -> (i32, i32) {
    %c0_i32 = arith.constant 0 : i32
    %c0_i32_0 = arith.constant 0 : i32
    %c0_i32_1 = arith.constant 0 : i32
    return %c0_i32, %c0_i32_0 : i32, i32
  }
  func.func @transform_4(%arg0: i32) -> (i32, i32) {
    %c0_i32 = arith.constant 0 : i32
    %c0_i32_0 = arith.constant 0 : i32
    %c0_i32_1 = arith.constant 0 : i32
    return %c0_i32, %c0_i32_0 : i32, i32
  }
  func.func @transform_5(%arg0: i32) -> (i32, i32) {
    %c0_i32 = arith.constant 0 : i32
    %c0_i32_0 = arith.constant 0 : i32
    %c0_i32_1 = arith.constant 0 : i32
    return %c0_i32, %c0_i32_0 : i32, i32
  }
  func.func @transform_6(%arg0: i32) -> (i32, i32) {
    %c0_i32 = arith.constant 0 : i32
    %c0_i32_0 = arith.constant 0 : i32
    %c0_i32_1 = arith.constant 0 : i32
    return %c0_i32, %c0_i32_0 : i32, i32
  }
  func.func @transform_7(%arg0: i32) -> (i32, i32) {
    %c0_i32 = arith.constant 0 : i32
    %c0_i32_0 = arith.constant 0 : i32
    return %arg0, %c0_i32 : i32, i32
  }
}

</mosaic_0001>

<llo_original>
// kernel: tpu_custom_call.1
$region0: #{tpu_custom_call.1}
  #allocation0 [shape = 'u32[]', space=smem, size = 0x4, offset = 0x4, fixed_abs, tag = 'smem constant byte address 0x4 - core index']
  #allocation1 [shape = 'u32[144,128]{1,0:T(1,128)}', space=vmem, size = 0x12000, scoped, tag = 'internal scratch']
  %s0 = inlined_call_operand.vmem [shape: f32[8,32], index: 0, kind: input, shape index: {}]
  %s1 = inlined_call_operand.vmem [shape: bf16[32,64], index: 1, kind: input, shape index: {}]
  %s2 = inlined_call_operand.vmem [shape: f32[1,64], index: 2, kind: input, shape index: {}]
  %s3 = inlined_call_operand.vmem [shape: bf16[64,32], index: 3, kind: input, shape index: {}]
  %s4 = inlined_call_operand.vmem [shape: f32[1,32], index: 4, kind: input, shape index: {}]
  %s5 = inlined_call_operand.vmem [shape: bf16[32,16], index: 5, kind: input, shape index: {}]
  %s6 = inlined_call_operand.vmem [shape: f32[1,16], index: 6, kind: input, shape index: {}]
  %s7 = inlined_call_operand.hbm [shape: f32[8,16], index: 7, kind: output, shape index: {}]
  %s8 = sld [smem:[#allocation0]]
  $region38: #{tpu_custom_call.1} parent=0
    _
  %s10 = ssub.s32 1, %s8
  %s11 = scalar_select 0, %s10, %s8
  $region1: #{tpu_custom_call.1} parent=0
    #allocation2 [shape = 'u8[4096]{0}', space=vmem, size = 0x1000, scoped, tag = 'output window, operand 0, single buffered']
    #allocation3 [shape = 's32[1]{0}', space=sflag, size = 0x4, scoped, tag = 'scoped memory for tpu_custom_call.1']
    %12 = vsyncpa [#allocation3], 0
    // Predicated region
    $region2: #{tpu_custom_call.1} parent=1 // pred_check
      _
    $region3: #{tpu_custom_call.1} parent=1 // pred_check_branch
      %14 = sbr.rel (0) target = $region5
    $region4: #{tpu_custom_call.1} parent=1 // pred_region
      _
    $region5: #{tpu_custom_call.1} parent=1 // pred_fallthru
      _
    // Predicated region
    $region6: #{tpu_custom_call.1} parent=1 // pred_check
      _
    $region7: #{tpu_custom_call.1} parent=1 // pred_check_branch
      %16 = sbr.rel (0) target = $region9
    $region8: #{tpu_custom_call.1} parent=1 // pred_region
      _
    $region9: #{tpu_custom_call.1} parent=1 // pred_fallthru
      _
    // Predicated region
    $region10: #{tpu_custom_call.1} parent=1 // pred_check
      _
    $region11: #{tpu_custom_call.1} parent=1 // pred_check_branch
      %18 = sbr.rel (0) target = $region13
    $region12: #{tpu_custom_call.1} parent=1 // pred_region
      _
    $region13: #{tpu_custom_call.1} parent=1 // pred_fallthru
      _
    // Predicated region
    $region14: #{tpu_custom_call.1} parent=1 // pred_check
      _
    $region15: #{tpu_custom_call.1} parent=1 // pred_check_branch
      %20 = sbr.rel (0) target = $region17
    $region16: #{tpu_custom_call.1} parent=1 // pred_region
      _
    $region17: #{tpu_custom_call.1} parent=1 // pred_fallthru
      _
    // Predicated region
    $region18: #{tpu_custom_call.1} parent=1 // pred_check
      _
    $region19: #{tpu_custom_call.1} parent=1 // pred_check_branch
      %22 = sbr.rel (0) target = $region21
    $region20: #{tpu_custom_call.1} parent=1 // pred_region
      _
    $region21: #{tpu_custom_call.1} parent=1 // pred_fallthru
      _
    // Predicated region
    $region22: #{tpu_custom_call.1} parent=1 // pred_check
      _
    $region23: #{tpu_custom_call.1} parent=1 // pred_check_branch
      %24 = sbr.rel (0) target = $region25
    $region24: #{tpu_custom_call.1} parent=1 // pred_region
      _
    $region25: #{tpu_custom_call.1} parent=1 // pred_fallthru
      _
    // Predicated region
    $region26: #{tpu_custom_call.1} parent=1 // pred_check
      _
    $region27: #{tpu_custom_call.1} parent=1 // pred_check_branch
      %26 = sbr.rel (0) target = $region29
    $region28: #{tpu_custom_call.1} parent=1 // pred_region
      _
    $region29: #{tpu_custom_call.1} parent=1 // pred_fallthru
      _
    %v28 = vld [vmem:[%s0] sm:$0xff]
    %v29 = vpack.c.bf16 %v28, %v28
    %v30 = vld [vmem:[%s1] sm:$0xf]
    %v31 = vld [vmem:[%s1 + $0x4] sm:$0xf]
    %v32 = vld [vmem:[%s1 + $0x8] sm:$0xf]
    %v33 = vld [vmem:[%s1 + $0xc] sm:$0xf]
    %v34 = vld [vmem:[%s2] sm:$0x1]
    %v36 = vlaneseq
    %v37 = vshrl.u32 %v36, 7
    %v38 = vsub.s32 0, %v37
    %v39 = vrot.slane %v34, %v38
    %v45 = vunpack.c.l.b16 %v30
    %v46 = vunpack.c.l.b16 %v31
    %v47 = vunpack.c.l.b16 %v32
    %v48 = vunpack.c.l.b16 %v33
    %v49 = vpack.c.b16 %v46, %v45
    %v50 = vpack.c.b16 %v48, %v47
    %vm53 = vcmask 261120
    %v55 = vsel %vm53, %v29, 0
    %57 = vmatprep.subr.bf16.mxu0 0
    %58 = vmatpush1.bf16.msra.mxu0 0
    %59 = vmatprep.subr.bf16.mxu0 0
    %60 = vmatpush1.bf16.msra.mxu0 0
    %61 = vmatprep.subr.bf16.mxu0 0
    %62 = vmatpush1.bf16.msra.mxu0 0
    %63 = vmatprep.subr.bf16.mxu0 0
    %64 = vmatpush1.bf16.msra.mxu0 0
    %65 = vmatprep.subr.bf16.mxu0 0
    %66 = vmatpush1.bf16.msra.mxu0 0
    %67 = vmatprep.subr.bf16.mxu0 0
    %68 = vmatpush1.bf16.msra.mxu0 0
    %69 = vmatprep.subr.bf16.mxu0 0
    %70 = vmatpush1.bf16.msra.mxu0 %v50
    %71 = vmatprep.subr.bf16.mxu0 0
    %72 = vmatpush1.bf16.msra.mxu0 %v49
    %73 = vmatprep.subr.bf16.mxu0 0
    %74 = vmatpush2.bf16.msra.mxu0 0
    %75 = vmatprep.subr.bf16.mxu0 0
    %76 = vmatpush2.bf16.msra.mxu0 0
    %77 = vmatprep.subr.bf16.mxu0 0
    %78 = vmatpush2.bf16.msra.mxu0 0
    %79 = vmatprep.subr.bf16.mxu0 0
    %80 = vmatpush2.bf16.msra.mxu0 0
    %81 = vmatprep.subr.bf16.mxu0 0
    %82 = vmatpush2.bf16.msra.mxu0 0
    %83 = vmatprep.subr.bf16.mxu0 0
    %84 = vmatpush2.bf16.msra.mxu0 0
    %85 = vmatprep.subr.bf16.mxu0 0
    %86 = vmatpush2.bf16.msra.mxu0 0
    %87 = vmatprep.subr.bf16.mxu0 0
    %88 = vmatpush2.bf16.msra.mxu0 0
    %89 = vmatprep.mubr.bf16.mxu0 0
    %90 = vmatmul.mubr.bf16.gmra.mxu0 %v55
    %v91 = vpop.f32.mrf.mxu0
    %v92 = vadd.f32 %v39, %v91
    %v93 = vpop.f32.mrf.mxu0
    %v94 = vpop.f32.mrf.mxu0
    %v95 = vpop.f32.mrf.mxu0
    %96 = vdwg.mxu0
    %v97 = vmax.f32 %v92, 0.0
    %v98 = vpack.c.bf16 %v97, %v97
    %v99 = vld [vmem:[%s3] sm:$0xf]
    %v100 = vld [vmem:[%s3 + $0x4] sm:$0xf]
    %v101 = vld [vmem:[%s3 + $0x8] sm:$0xf]
    %v102 = vld [vmem:[%s3 + $0xc] sm:$0xf]
    %v103 = vld [vmem:[%s3 + $0x10] sm:$0xf]
    %v104 = vld [vmem:[%s3 + $0x14] sm:$0xf]
    %v105 = vld [vmem:[%s3 + $0x18] sm:$0xf]
    %v106 = vld [vmem:[%s3 + $0x1c] sm:$0xf]
    %v107 = vld [vmem:[%s4] sm:$0x1]
    %v109 = vlaneseq
    %v110 = vshrl.u32 %v109, 7
    %v111 = vsub.s32 0, %v110
    %v112 = vrot.slane %v107, %v111
    %v122 = vunpack.c.l.b16 %v99
    %v123 = vunpack.c.l.b16 %v100
    %v124 = vunpack.c.l.b16 %v101
    %v125 = vunpack.c.l.b16 %v102
    %v126 = vunpack.c.l.b16 %v103
    %v127 = vunpack.c.l.b16 %v104
    %v128 = vunpack.c.l.b16 %v105
    %v129 = vunpack.c.l.b16 %v106
    %v130 = vpack.c.b16 %v123, %v122
    %v131 = vpack.c.b16 %v125, %v124
    %v132 = vpack.c.b16 %v127, %v126
    %v133 = vpack.c.b16 %v129, %v128
    %vm138 = vcmask 523264
    %v140 = vsel %vm138, %v98, 0
    %142 = vmatprep.subr.bf16.mxu0 0
    %143 = vmatpush1.bf16.msra.mxu0 0
    %144 = vmatprep.subr.bf16.mxu0 0
    %145 = vmatpush1.bf16.msra.mxu0 0
    %146 = vmatprep.subr.bf16.mxu0 0
    %147 = vmatpush1.bf16.msra.mxu0 0
    %148 = vmatprep.subr.bf16.mxu0 0
    %149 = vmatpush1.bf16.msra.mxu0 0
    %150 = vmatprep.subr.bf16.mxu0 0
    %151 = vmatpush1.bf16.msra.mxu0 %v133
    %152 = vmatprep.subr.bf16.mxu0 0
    %153 = vmatpush1.bf16.msra.mxu0 %v132
    %154 = vmatprep.subr.bf16.mxu0 0
    %155 = vmatpush1.bf16.msra.mxu0 %v131
    %156 = vmatprep.subr.bf16.mxu0 0
    %157 = vmatpush1.bf16.msra.mxu0 %v130
    %158 = vmatprep.subr.bf16.mxu0 0
    %159 = vmatpush2.bf16.msra.mxu0 0
    %160 = vmatprep.subr.bf16.mxu0 0
    %161 = vmatpush2.bf16.msra.mxu0 0
    %162 = vmatprep.subr.bf16.mxu0 0
    %163 = vmatpush2.bf16.msra.mxu0 0
    %164 = vmatprep.subr.bf16.mxu0 0
    %165 = vmatpush2.bf16.msra.mxu0 0
    %166 = vmatprep.subr.bf16.mxu0 0
    %167 = vmatpush2.bf16.msra.mxu0 0
    %168 = vmatprep.subr.bf16.mxu0 0
    %169 = vmatpush2.bf16.msra.mxu0 0
    %170 = vmatprep.subr.bf16.mxu0 0
    %171 = vmatpush2.bf16.msra.mxu0 0
    %172 = vmatprep.subr.bf16.mxu0 0
    %173 = vmatpush2.bf16.msra.mxu0 0
    %174 = vmatprep.mubr.bf16.mxu0 0
    %175 = vmatmul.mubr.bf16.gmra.mxu0 %v140
    %v176 = vpop.f32.mrf.mxu0
    %v177 = vadd.f32 %v112, %v176
    %v178 = vpop.f32.mrf.mxu0
    %v179 = vpop.f32.mrf.mxu0
    %v180 = vpop.f32.mrf.mxu0
    %181 = vdwg.mxu0
    %v182 = vmax.f32 %v177, 0.0
    %v183 = vpack.c.bf16 %v182, %v182
    %v184 = vld [vmem:[%s5] sm:$0xf]
    %v185 = vld [vmem:[%s5 + $0x4] sm:$0xf]
    %v186 = vld [vmem:[%s5 + $0x8] sm:$0xf]
    %v187 = vld [vmem:[%s5 + $0xc] sm:$0xf]
    %v188 = vld [vmem:[%s6] sm:$0x1]
    %v190 = vlaneseq
    %v191 = vshrl.u32 %v190, 7
    %v192 = vsub.s32 0, %v191
    %v193 = vrot.slane %v188, %v192
    %v199 = vunpack.c.l.b16 %v184
    %v200 = vunpack.c.l.b16 %v185
    %v201 = vunpack.c.l.b16 %v186
    %v202 = vunpack.c.l.b16 %v187
    %v203 = vpack.c.b16 %v200, %v199
    %v204 = vpack.c.b16 %v202, %v201
    %v208 = vsel %vm53, %v183, 0
    %210 = vmatprep.subr.bf16.mxu0 0
    %211 = vmatpush1.bf16.msra.mxu0 0
    %212 = vmatprep.subr.bf16.mxu0 0
    %213 = vmatpush1.bf16.msra.mxu0 0
    %214 = vmatprep.subr.bf16.mxu0 0
    %215 = vmatpush1.bf16.msra.mxu0 0
    %216 = vmatprep.subr.bf16.mxu0 0
    %217 = vmatpush1.bf16.msra.mxu0 0
    %218 = vmatprep.subr.bf16.mxu0 0
    %219 = vmatpush1.bf16.msra.mxu0 0
    %220 = vmatprep.subr.bf16.mxu0 0
    %221 = vmatpush1.bf16.msra.mxu0 0
    %222 = vmatprep.subr.bf16.mxu0 0
    %223 = vmatpush1.bf16.msra.mxu0 %v204
    %224 = vmatprep.subr.bf16.mxu0 0
    %225 = vmatpush1.bf16.msra.mxu0 %v203
    %226 = vmatprep.subr.bf16.mxu0 0
    %227 = vmatpush2.bf16.msra.mxu0 0
    %228 = vmatprep.subr.bf16.mxu0 0
    %229 = vmatpush2.bf16.msra.mxu0 0
    %230 = vmatprep.subr.bf16.mxu0 0
    %231 = vmatpush2.bf16.msra.mxu0 0
    %232 = vmatprep.subr.bf16.mxu0 0
    %233 = vmatpush2.bf16.msra.mxu0 0
    %234 = vmatprep.subr.bf16.mxu0 0
    %235 = vmatpush2.bf16.msra.mxu0 0
    %236 = vmatprep.subr.bf16.mxu0 0
    %237 = vmatpush2.bf16.msra.mxu0 0
    %238 = vmatprep.subr.bf16.mxu0 0
    %239 = vmatpush2.bf16.msra.mxu0 0
    %240 = vmatprep.subr.bf16.mxu0 0
    %241 = vmatpush2.bf16.msra.mxu0 0
    %242 = vmatprep.mubr.bf16.mxu0 0
    %243 = vmatmul.mubr.bf16.gmra.mxu0 %v208
    %v244 = vpop.f32.mrf.mxu0
    %v245 = vadd.f32 %v193, %v244
    %v246 = vpop.f32.mrf.mxu0
    %v247 = vpop.f32.mrf.mxu0
    %v248 = vpop.f32.mrf.mxu0
    %249 = vdwg.mxu0
    %vm250 = vcmask 130048
    %251 = vst.msk [vmem:[#allocation2] sm:$0xff] %vm250, %v245
    // Predicated region
    $region30: #{tpu_custom_call.1} parent=1 // pred_check
      _
    $region31: #{tpu_custom_call.1} parent=1 // pred_check_branch
      %253 = sbr.rel (0) target = $region33
    $region32: #{tpu_custom_call.1} parent=1 // pred_region
      %s255 = ssub.s32 128, 128
      %256 = vsyncadd [#allocation3], %s255
      %s258 = sshll.u32 [#allocation2], 4
      %s259 = int_to_ptr.vmem [resolvable:$true] %s258
      %261 = dma.vmem_to_hbm [thread:$0]  %s259, 128, %s7, [#allocation3]
    $region33: #{tpu_custom_call.1} parent=1 // pred_fallthru
      _
    // Predicated region
    $region34: #{tpu_custom_call.1} parent=1 // pred_check
      _
    $region35: #{tpu_custom_call.1} parent=1 // pred_check_branch
      %263 = sbr.rel (0) target = $region37
    $region36: #{tpu_custom_call.1} parent=1 // pred_region
      %264 = dma.done [#allocation3], 128
    $region37: #{tpu_custom_call.1} parent=1 // pred_fallthru
      _
    %265 = vsyncpa [#allocation3], 1

</llo_original>
